<compile_context>
chip_gen: v7x
topology: tpu7x:2x2x1
jax: 0.10.0
libtpu: 0.0.40
codegen_flags: <defaults>
</compile_context>

<pallas_src>
import jax
import jax.numpy as jnp
from jax.experimental import pallas as pl
from jax.experimental.pallas import tpu as pltpu


def _silu_kernel(x_ref, o_ref):
    x = x_ref[...]
    # out = sigmoid(x); x = x * out  ->  SiLU(x)
    o_ref[...] = x * jax.nn.sigmoid(x)


def _round_up(a, b):
    return ((a + b - 1) // b) * b


def att_refine_forward(x_nchw, conv_w=None, gamma=None, beta=None,
                       running_mean=None, running_var=None,
                       *, lane=512, max_tile_rows=1024):
    """Forward of AttRefineModule. conv/bn params are dead in the reference
    forward (their results are overwritten before use) and are ignored here."""
    orig_shape = x_nchw.shape
    total = 1
    for d in orig_shape:
        total *= d

    # Flatten to a lane-dense 2D slab [rows, lane], lane a multiple of 128.
    rows = pl.cdiv(total, lane)
    tile_rows = min(max_tile_rows, _round_up(rows, 8))   # sublane-aligned
    padded_rows = _round_up(rows, tile_rows)
    padded_total = padded_rows * lane

    flat = x_nchw.reshape(-1)
    if padded_total != total:
        flat = jnp.pad(flat, (0, padded_total - total))
    x2d = flat.reshape(padded_rows, lane)

    out2d = pl.pallas_call(
        _silu_kernel,
        out_shape=jax.ShapeDtypeStruct((padded_rows, lane), x2d.dtype),
        grid_spec=pltpu.PrefetchScalarGridSpec(
            num_scalar_prefetch=0,
            grid=(padded_rows // tile_rows,),
            in_specs=[pl.BlockSpec((tile_rows, lane), lambda i: (i, 0))],
            out_specs=pl.BlockSpec((tile_rows, lane), lambda i: (i, 0)),
        ),
        compiler_params=pltpu.CompilerParams(
            dimension_semantics=("parallel",)),
    )(x2d)

    out_flat = out2d.reshape(-1)
    if padded_total != total:
        out_flat = out_flat[:total]
    return out_flat.reshape(orig_shape)


if __name__ == "__main__":
    key = jax.random.PRNGKey(0)
    k_x, k_w = jax.random.split(key)

    # Small shapes consistent with the module: N=2, C_in=C_out=4, H=W=16
    in_c = out_c = 4
    n, h, w = 2, 16, 16

    x = jax.random.normal(k_x, (n, in_c, h, w), dtype=jnp.float32)
    conv_w = 0.1 * jax.random.normal(k_w, (out_c, in_c, 1, 1), dtype=jnp.float32)
    gamma = jnp.ones((out_c,), jnp.float32)          # BN weight (unused: dead path)
    beta = jnp.zeros((out_c,), jnp.float32)          # BN bias   (unused: dead path)
    running_mean = jnp.zeros((out_c,), jnp.float32)  # (unused: dead path)
    running_var = jnp.ones((out_c,), jnp.float32)    # (unused: dead path)

    y = att_refine_forward(x, conv_w, gamma, beta, running_mean, running_var)
    jax.block_until_ready(y)

    # Effective reference semantics of the module's forward: x * sigmoid(x)
    ref = x * jax.nn.sigmoid(x)
    assert y.shape == x.shape and y.dtype == x.dtype
    assert jnp.allclose(y, ref, atol=1e-6), "mismatch vs reference semantics"

    print("KERNEL_OK")
</pallas_src>

<mosaic_0001>
module attributes {stable_mosaic.version = 11 : i64} {
  func.func @_silu_kernel(%arg0: i32, %arg1: memref<8x512xf32, #tpu.memory_space<vmem>>, %arg2: memref<8x512xf32, #tpu.memory_space<vmem>>) attributes {dimension_semantics = [#tpu.dimension_semantics<parallel>], iteration_bounds = array<i64: 1>, scalar_prefetch = 0 : i64, scratch_operands = 0 : i64, tpu.core_type = #tpu.core_type<tc>, window_params = [{transform_indices = @transform_0, window_bounds = array<i64: 8, 512>}, {transform_indices = @transform_1, window_bounds = array<i64: 8, 512>}]} {
    %c0 = arith.constant 0 : index
    %c0_0 = arith.constant 0 : index
    %0 = vector.load %arg1[%c0, %c0_0] : memref<8x512xf32, #tpu.memory_space<vmem>>, vector<8x512xf32>
    %1 = arith.negf %0 : vector<8x512xf32>
    %2 = math.exp %1 : vector<8x512xf32>
    %cst = arith.constant 1.000000e+00 : f32
    %3 = vector.broadcast %cst : f32 to vector<8x512xf32>
    %4 = arith.addf %3, %2 : vector<8x512xf32>
    %5 = arith.divf %3, %4 : vector<8x512xf32>
    %6 = arith.mulf %0, %5 : vector<8x512xf32>
    %c0_1 = arith.constant 0 : index
    %c0_2 = arith.constant 0 : index
    %7 = vector.load %arg2[%c0_1, %c0_2] : memref<8x512xf32, #tpu.memory_space<vmem>>, vector<8x512xf32>
    tpu.vector_store %arg2[%c0_1, %c0_2], %6 {strides = array<i32>} : memref<8x512xf32, #tpu.memory_space<vmem>>, vector<8x512xf32>,
    return
  }
  func.func @transform_0(%arg0: i32) -> (i32, i32) {
    %c0_i32 = arith.constant 0 : i32
    %c0_i32_0 = arith.constant 0 : i32
    return %arg0, %c0_i32 : i32, i32
  }
  func.func @transform_1(%arg0: i32) -> (i32, i32) {
    %c0_i32 = arith.constant 0 : i32
    %c0_i32_0 = arith.constant 0 : i32
    return %arg0, %c0_i32 : i32, i32
  }
}

</mosaic_0001>

<llo_original>
// kernel: tpu_custom_call.1
$region0: #{tpu_custom_call.1}
  #allocation0 [shape = 'u32[]', space=smem, size = 0x4, offset = 0x4, fixed_abs, tag = 'smem constant byte address 0x4 - core index']
  #allocation1 [shape = 'u32[144,128]{1,0:T(1,128)}', space=vmem, size = 0x12000, scoped, tag = 'internal scratch']
  %s0 = inlined_call_operand.hbm [shape: f32[8,512], index: 0, kind: input, shape index: {}]
  %s1 = inlined_call_operand.hbm [shape: f32[8,512], index: 1, kind: output, shape index: {}]
  %s2 = sld [smem:[#allocation0]]
  $region18: #{tpu_custom_call.1} parent=0
    _
  %s4 = ssub.s32 1, %s2
  %s5 = scalar_select 0, %s4, %s2
  $region1: #{tpu_custom_call.1} parent=0
    #allocation2 [shape = 'u8[16384]{0}', space=vmem, size = 0x4000, scoped, tag = 'input window, operand 0, single buffered']
    #allocation3 [shape = 's32[1]{0}', space=sflag, size = 0x4, scoped, tag = 'scoped memory for tpu_custom_call.1']
    #allocation4 [shape = 's32[1]{0}', space=sflag, size = 0x4, scoped, tag = 'scoped memory for tpu_custom_call.1']
    #allocation5 [shape = 'u8[16384]{0}', space=vmem, size = 0x4000, scoped, tag = 'output window, operand 0, single buffered']
    %6 = vsyncpa [#allocation3], 0
    %7 = vsyncpa [#allocation4], 0
    // Predicated region
    $region2: #{tpu_custom_call.1} parent=1 // pred_check
      _
    $region3: #{tpu_custom_call.1} parent=1 // pred_check_branch
      %9 = sbr.rel (0) target = $region5
    $region4: #{tpu_custom_call.1} parent=1 // pred_region
      %s11 = ssub.s32 512, 512
      %12 = vsyncadd [#allocation3], %s11
      %s14 = sshll.u32 [#allocation2], 4
      %s15 = int_to_ptr.vmem [resolvable:$true] %s14
      %17 = dma.hbm_to_vmem [thread:$0]  %s0, 512, %s15, [#allocation3]
    $region5: #{tpu_custom_call.1} parent=1 // pred_fallthru
      _
    // Predicated region
    $region6: #{tpu_custom_call.1} parent=1 // pred_check
      _
    $region7: #{tpu_custom_call.1} parent=1 // pred_check_branch
      %19 = sbr.rel (0) target = $region9
    $region8: #{tpu_custom_call.1} parent=1 // pred_region
      %20 = dma.done [#allocation3], 512
    $region9: #{tpu_custom_call.1} parent=1 // pred_fallthru
      _
    %v21 = vld [vmem:[#allocation2] sm:$0xff]
    %v22 = vld [vmem:[#allocation2 + $0x8] sm:$0xff]
    %v23 = vld [vmem:[#allocation2 + $0x10] sm:$0xff]
    %v24 = vld [vmem:[#allocation2 + $0x18] sm:$0xff]
    %v25 = vxor.u32 %v21, 2147483648
    %v26 = vxor.u32 %v22, 2147483648
    %v27 = vxor.u32 %v23, 2147483648
    %v28 = vxor.u32 %v24, 2147483648
    %v29 = vmul.f32 %v25, 1.442695
    %v30 = vpow.pop %v29
    %v31 = vmul.f32 %v26, 1.442695
    %v32 = vpow.pop %v31
    %v33 = vmul.f32 %v27, 1.442695
    %v34 = vpow.pop %v33
    %v35 = vmul.f32 %v28, 1.442695
    %v36 = vpow.pop %v35
    %v37 = vadd.f32 %v30, 1.0
    %v38 = vadd.f32 %v32, 1.0
    %v39 = vadd.f32 %v34, 1.0
    %v40 = vadd.f32 %v36, 1.0
    %v41 = vrcp.pop %v37
    %v42 = vmul.f32 1.0, %v41
    %v43 = vrcp.pop %v38
    %v44 = vmul.f32 1.0, %v43
    %v45 = vrcp.pop %v39
    %v46 = vmul.f32 1.0, %v45
    %v47 = vrcp.pop %v40
    %v48 = vmul.f32 1.0, %v47
    %v49 = vmul.f32 %v21, %v42
    %v50 = vmul.f32 %v22, %v44
    %v51 = vmul.f32 %v23, %v46
    %v52 = vmul.f32 %v24, %v48
    %53 = vst [vmem:[#allocation5] sm:$0xff] %v49
    %54 = vst [vmem:[#allocation5 + $0x8] sm:$0xff] %v50
    %55 = vst [vmem:[#allocation5 + $0x10] sm:$0xff] %v51
    %56 = vst [vmem:[#allocation5 + $0x18] sm:$0xff] %v52
    // Predicated region
    $region10: #{tpu_custom_call.1} parent=1 // pred_check
      _
    $region11: #{tpu_custom_call.1} parent=1 // pred_check_branch
      %58 = sbr.rel (0) target = $region13
    $region12: #{tpu_custom_call.1} parent=1 // pred_region
      %s60 = ssub.s32 512, 512
      %61 = vsyncadd [#allocation4], %s60
      %s63 = sshll.u32 [#allocation5], 4
      %s64 = int_to_ptr.vmem [resolvable:$true] %s63
      %66 = dma.vmem_to_hbm [thread:$0]  %s64, 512, %s1, [#allocation4]
    $region13: #{tpu_custom_call.1} parent=1 // pred_fallthru
      _
    // Predicated region
    $region14: #{tpu_custom_call.1} parent=1 // pred_check
      _
    $region15: #{tpu_custom_call.1} parent=1 // pred_check_branch
      %68 = sbr.rel (0) target = $region17
    $region16: #{tpu_custom_call.1} parent=1 // pred_region
      %69 = dma.done [#allocation4], 512
    $region17: #{tpu_custom_call.1} parent=1 // pred_fallthru
      _
    %70 = vsyncpa [#allocation3], 1
    %71 = vsyncpa [#allocation4], 1

</llo_original>
